<compile_context>
chip_gen: v7x
topology: tpu7x:2x2x1
jax: 0.10.0
libtpu: 0.0.40
codegen_flags: <defaults>
</compile_context>

<pallas_src>
import functools

import jax
import jax.numpy as jnp
from jax.experimental import pallas as pl
from jax.experimental.pallas import tpu as pltpu

OBS_AFTER_PREPROC = 2              # CartPole-v1
FC1_IN = 50 + OBS_AFTER_PREPROC    # 52
FC1_OUT = 250
NUM_ACTIONS = 2                    # CartPole-v1 action space

# Zero-padded, tile-friendly parameter widths.
FC1_OUT_PAD = 256   # 250 -> 256: lane-aligned hidden width (unmasked vld/vst)
OUT_PAD = 8         # 2 -> 8: narrow output writeback; wrapper slices [:, :2]


def _round_up(n, m):
    return (n + m - 1) // m * m


def _qnet_kernel(x_ref, w1_ref, b1_ref, w2_ref, b2_ref, out_ref):
    # x:  [TB, 52]  f32     w1: [52, 256] bf16   b1: [1, 256] f32
    # w2: [256, 8]  bf16    b2: [1, 8]    f32    out:[TB, 8]   f32
    x = x_ref[...].astype(jnp.bfloat16)                      # fused f32->bf16 cast
    h = jnp.dot(x, w1_ref[...], preferred_element_type=jnp.float32)
    h = jnp.maximum(h + b1_ref[...], 0.0)                    # bias + ReLU in f32 (VPU)
    y = jnp.dot(h.astype(jnp.bfloat16), w2_ref[...],         # bf16 MXU feed, f32 acc
                preferred_element_type=jnp.float32)
    out_ref[...] = y + b2_ref[...]


def pad_params(w1, b1, w2, b2):
    """Zero-pad to kernel shapes; bf16 for MXU inputs, f32 biases.

    Inputs are stored [in, out] (transposed vs PyTorch's [out, in]):
      w1: [52, 250], b1: [250], w2: [250, 2], b2: [2].
    """
    w1p = (jnp.zeros((FC1_IN, FC1_OUT_PAD), jnp.float32)
           .at[:, :FC1_OUT].set(w1).astype(jnp.bfloat16))
    b1p = jnp.zeros((1, FC1_OUT_PAD), jnp.float32).at[0, :FC1_OUT].set(b1)
    w2p = (jnp.zeros((FC1_OUT_PAD, OUT_PAD), jnp.float32)
           .at[:FC1_OUT, :NUM_ACTIONS].set(w2).astype(jnp.bfloat16))
    b2p = jnp.zeros((1, OUT_PAD), jnp.float32).at[0, :NUM_ACTIONS].set(b2)
    return w1p, b1p, w2p, b2p


@functools.partial(jax.jit, static_argnames=("block_b",))
def qnetwork_forward(x, w1p, b1p, w2p, b2p, *, block_b=4096):
    """x: [B, 52] f32 -> [B, num_actions] f32 Q-values."""
    B = x.shape[0]
    b8 = _round_up(B, 8)
    tb = min(block_b, b8)
    # v7x megacore: if the whole batch would fit in one tile but is large,
    # split into 2 tiles so dimension_semantics=("parallel",) can use both TCs.
    if b8 >= 512 and tb == b8:
        tb = _round_up(-(-b8 // 2), 8)
    b_pad = _round_up(B, tb)

    # Only the batch dim is padded (zeros); feature pad/cast happens in-kernel.
    if b_pad != B:
        x = jnp.pad(x, ((0, b_pad - B), (0, 0)))

    out = pl.pallas_call(
        _qnet_kernel,
        out_shape=jax.ShapeDtypeStruct((b_pad, OUT_PAD), jnp.float32),
        grid=(b_pad // tb,),
        in_specs=[
            pl.BlockSpec((tb, FC1_IN), lambda i: (i, 0)),              # batch-tiled
            pl.BlockSpec((FC1_IN, FC1_OUT_PAD), lambda i: (0, 0)),      # resident
            pl.BlockSpec((1, FC1_OUT_PAD), lambda i: (0, 0)),           # resident
            pl.BlockSpec((FC1_OUT_PAD, OUT_PAD), lambda i: (0, 0)),     # resident
            pl.BlockSpec((1, OUT_PAD), lambda i: (0, 0)),               # resident
        ],
        out_specs=pl.BlockSpec((tb, OUT_PAD), lambda i: (i, 0)),
        compiler_params=pltpu.CompilerParams(
            dimension_semantics=("parallel",)),     # shard batch tiles across TCs
    )(x, w1p, b1p, w2p, b2p)

    return out[:B, :NUM_ACTIONS]


def init_params(key):
    """Deterministic init mimicking nn.Linear's uniform(-1/sqrt(fan_in), ...)."""
    k1, k2, k3, k4 = jax.random.split(key, 4)
    bound1 = 1.0 / jnp.sqrt(FC1_IN)
    bound2 = 1.0 / jnp.sqrt(FC1_OUT)
    w1 = jax.random.uniform(k1, (FC1_IN, FC1_OUT), jnp.float32, -bound1, bound1)
    b1 = jax.random.uniform(k2, (FC1_OUT,), jnp.float32, -bound1, bound1)
    w2 = jax.random.uniform(k3, (FC1_OUT, NUM_ACTIONS), jnp.float32, -bound2, bound2)
    b2 = jax.random.uniform(k4, (NUM_ACTIONS,), jnp.float32, -bound2, bound2)
    return w1, b1, w2, b2


def reference_forward_bf16(x, w1p, b1p, w2p, b2p):
    """Pure-JAX reference mirroring the kernel's bf16-in / f32-acc math."""
    h = jnp.dot(x.astype(jnp.bfloat16), w1p,
                preferred_element_type=jnp.float32) + b1p
    h = jnp.maximum(h, 0.0)
    y = jnp.dot(h.astype(jnp.bfloat16), w2p,
                preferred_element_type=jnp.float32) + b2p
    return y[:, :NUM_ACTIONS]


def reference_forward_f32(x, w1, b1, w2, b2):
    """Full-precision PyTorch-equivalent reference."""
    h = jnp.maximum(x @ w1 + b1, 0.0)
    return h @ w2 + b2


if __name__ == "__main__":
    key = jax.random.PRNGKey(0)
    kp, kx1, kx2 = jax.random.split(key, 3)
    w1, b1, w2, b2 = init_params(kp)
    w1p, b1p, w2p, b2p = pad_params(w1, b1, w2, b2)

    # Small batch (single-tile RL path).
    B = 8
    x = jax.random.normal(kx1, (B, FC1_IN), jnp.float32)
    out = jax.block_until_ready(qnetwork_forward(x, w1p, b1p, w2p, b2p))
    assert out.shape == (B, NUM_ACTIONS)
    ref_bf16 = reference_forward_bf16(x, w1p, b1p, w2p, b2p)
    assert jnp.allclose(out, ref_bf16, atol=5e-3, rtol=5e-3), "mismatch vs bf16 ref"
    ref_f32 = reference_forward_f32(x, w1, b1, w2, b2)
    assert jnp.allclose(out, ref_f32, atol=5e-2, rtol=5e-2), "mismatch vs f32 ref"

    # Larger batch: exercises batch padding, multi-tile grid, and the
    # two-tile (v7x megacore) split on the default block_b.
    B2 = 600
    x2 = jax.random.normal(kx2, (B2, FC1_IN), jnp.float32)
    out2 = jax.block_until_ready(qnetwork_forward(x2, w1p, b1p, w2p, b2p))
    assert out2.shape == (B2, NUM_ACTIONS)
    ref2 = reference_forward_bf16(x2, w1p, b1p, w2p, b2p)
    assert jnp.allclose(out2, ref2, atol=5e-3, rtol=5e-3), "mismatch vs bf16 ref (B2)"

    print("KERNEL_OK")
</pallas_src>

<mosaic_0001>
module attributes {stable_mosaic.version = 11 : i64} {
  func.func @_qnet_kernel(%arg0: i32, %arg1: memref<8x52xf32, #tpu.memory_space<vmem>>, %arg2: memref<52x256xbf16, #tpu.memory_space<vmem>>, %arg3: memref<1x256xf32, #tpu.memory_space<vmem>>, %arg4: memref<256x8xbf16, #tpu.memory_space<vmem>>, %arg5: memref<1x8xf32, #tpu.memory_space<vmem>>, %arg6: memref<8x8xf32, #tpu.memory_space<vmem>>) attributes {dimension_semantics = [#tpu.dimension_semantics<parallel>], iteration_bounds = array<i64: 1>, scalar_prefetch = 0 : i64, scratch_operands = 0 : i64, tpu.core_type = #tpu.core_type<tc>, window_params = [{transform_indices = @transform_0, window_bounds = array<i64: 8, 52>}, {pipeline_mode = #tpu.pipeline_mode<synchronous>, transform_indices = @transform_1, window_bounds = array<i64: 52, 256>}, {pipeline_mode = #tpu.pipeline_mode<synchronous>, transform_indices = @transform_2, window_bounds = array<i64: 1, 256>}, {pipeline_mode = #tpu.pipeline_mode<synchronous>, transform_indices = @transform_3, window_bounds = array<i64: 256, 8>}, {pipeline_mode = #tpu.pipeline_mode<synchronous>, transform_indices = @transform_4, window_bounds = array<i64: 1, 8>}, {transform_indices = @transform_5, window_bounds = array<i64: 8, 8>}]} {
    %c0 = arith.constant 0 : index
    %c0_0 = arith.constant 0 : index
    %0 = vector.load %arg1[%c0, %c0_0] : memref<8x52xf32, #tpu.memory_space<vmem>>, vector<8x52xf32>
    %1 = arith.truncf %0 : vector<8x52xf32> to vector<8x52xbf16>
    %c0_1 = arith.constant 0 : index
    %c0_2 = arith.constant 0 : index
    %2 = vector.load %arg2[%c0_1, %c0_2] : memref<52x256xbf16, #tpu.memory_space<vmem>>, vector<52x256xbf16>
    %cst = arith.constant dense<0.000000e+00> : vector<8x256xf32>
    %3 = tpu.matmul %1, %2, %cst {dimension_numbers = #tpu.dot_dimension_numbers<[1], [0], [0], [1], [0, 0, 1, 1], [], []>} : vector<8x52xbf16>, vector<52x256xbf16>, vector<8x256xf32> -> vector<8x256xf32>
    %c0_3 = arith.constant 0 : index
    %c0_4 = arith.constant 0 : index
    %4 = vector.load %arg3[%c0_3, %c0_4] : memref<1x256xf32, #tpu.memory_space<vmem>>, vector<1x256xf32>
    %5 = vector.broadcast %4 : vector<1x256xf32> to vector<8x256xf32>
    %6 = arith.addf %3, %5 : vector<8x256xf32>
    %cst_5 = arith.constant 0.000000e+00 : f32
    %7 = vector.broadcast %cst_5 : f32 to vector<8x256xf32>
    %8 = arith.maximumf %6, %7 : vector<8x256xf32>
    %9 = arith.truncf %8 : vector<8x256xf32> to vector<8x256xbf16>
    %c0_6 = arith.constant 0 : index
    %c0_7 = arith.constant 0 : index
    %10 = vector.load %arg4[%c0_6, %c0_7] : memref<256x8xbf16, #tpu.memory_space<vmem>>, vector<256x8xbf16>
    %cst_8 = arith.constant dense<0.000000e+00> : vector<8x8xf32>
    %11 = tpu.matmul %9, %10, %cst_8 {dimension_numbers = #tpu.dot_dimension_numbers<[1], [0], [0], [1], [0, 0, 1, 1], [], []>} : vector<8x256xbf16>, vector<256x8xbf16>, vector<8x8xf32> -> vector<8x8xf32>
    %c0_9 = arith.constant 0 : index
    %c0_10 = arith.constant 0 : index
    %12 = vector.load %arg5[%c0_9, %c0_10] : memref<1x8xf32, #tpu.memory_space<vmem>>, vector<1x8xf32>
    %13 = vector.broadcast %12 : vector<1x8xf32> to vector<8x8xf32>
    %14 = arith.addf %11, %13 : vector<8x8xf32>
    %c0_11 = arith.constant 0 : index
    %c0_12 = arith.constant 0 : index
    %15 = vector.load %arg6[%c0_11, %c0_12] : memref<8x8xf32, #tpu.memory_space<vmem>>, vector<8x8xf32>
    tpu.vector_store %arg6[%c0_11, %c0_12], %14 {strides = array<i32>} : memref<8x8xf32, #tpu.memory_space<vmem>>, vector<8x8xf32>,
    return
  }
  func.func @transform_0(%arg0: i32) -> (i32, i32) {
    %c0_i32 = arith.constant 0 : i32
    %c0_i32_0 = arith.constant 0 : i32
    return %arg0, %c0_i32 : i32, i32
  }
  func.func @transform_1(%arg0: i32) -> (i32, i32) {
    %c0_i32 = arith.constant 0 : i32
    %c0_i32_0 = arith.constant 0 : i32
    %c0_i32_1 = arith.constant 0 : i32
    return %c0_i32, %c0_i32_0 : i32, i32
  }
  func.func @transform_2(%arg0: i32) -> (i32, i32) {
    %c0_i32 = arith.constant 0 : i32
    %c0_i32_0 = arith.constant 0 : i32
    %c0_i32_1 = arith.constant 0 : i32
    return %c0_i32, %c0_i32_0 : i32, i32
  }
  func.func @transform_3(%arg0: i32) -> (i32, i32) {
    %c0_i32 = arith.constant 0 : i32
    %c0_i32_0 = arith.constant 0 : i32
    %c0_i32_1 = arith.constant 0 : i32
    return %c0_i32, %c0_i32_0 : i32, i32
  }
  func.func @transform_4(%arg0: i32) -> (i32, i32) {
    %c0_i32 = arith.constant 0 : i32
    %c0_i32_0 = arith.constant 0 : i32
    %c0_i32_1 = arith.constant 0 : i32
    return %c0_i32, %c0_i32_0 : i32, i32
  }
  func.func @transform_5(%arg0: i32) -> (i32, i32) {
    %c0_i32 = arith.constant 0 : i32
    %c0_i32_0 = arith.constant 0 : i32
    return %arg0, %c0_i32 : i32, i32
  }
}

</mosaic_0001>

<llo_original>
// kernel: qnetwork_forward.1
$region0: #{qnetwork_forward.1}
  #allocation0 [shape = 'u32[]', space=smem, size = 0x4, offset = 0x4, fixed_abs, tag = 'smem constant byte address 0x4 - core index']
  #allocation1 [shape = 'u32[144,128]{1,0:T(1,128)}', space=vmem, size = 0x12000, scoped, tag = 'internal scratch']
  %s0 = inlined_call_operand.vmem [shape: f32[8,52], index: 0, kind: input, shape index: {}]
  %s1 = inlined_call_operand.vmem [shape: bf16[52,256], index: 1, kind: input, shape index: {}]
  %s2 = inlined_call_operand.vmem [shape: f32[1,256], index: 2, kind: input, shape index: {}]
  %s3 = inlined_call_operand.vmem [shape: bf16[256,8], index: 3, kind: input, shape index: {}]
  %s4 = inlined_call_operand.vmem [shape: f32[1,8], index: 4, kind: input, shape index: {}]
  %s5 = inlined_call_operand.vmem [shape: f32[8,8], index: 5, kind: output, shape index: {}]
  %s6 = sld [smem:[#allocation0]]
  $region30: #{qnetwork_forward.1} parent=0
    _
  %s8 = ssub.s32 1, %s6
  %s9 = scalar_select 0, %s8, %s6
  // Predicated region
  $region2: #{qnetwork_forward.1} parent=0 // pred_check
    _
  $region3: #{qnetwork_forward.1} parent=0 // pred_check_branch
    %11 = sbr.rel (0) target = $region5
  $region4: #{qnetwork_forward.1} parent=0 // pred_region
    _
  $region5: #{qnetwork_forward.1} parent=0 // pred_fallthru
    _
  // Predicated region
  $region6: #{qnetwork_forward.1} parent=0 // pred_check
    _
  $region7: #{qnetwork_forward.1} parent=0 // pred_check_branch
    %13 = sbr.rel (0) target = $region9
  $region8: #{qnetwork_forward.1} parent=0 // pred_region
    _
  $region9: #{qnetwork_forward.1} parent=0 // pred_fallthru
    _
  // Predicated region
  $region10: #{qnetwork_forward.1} parent=0 // pred_check
    _
  $region11: #{qnetwork_forward.1} parent=0 // pred_check_branch
    %15 = sbr.rel (0) target = $region13
  $region12: #{qnetwork_forward.1} parent=0 // pred_region
    _
  $region13: #{qnetwork_forward.1} parent=0 // pred_fallthru
    _
  // Predicated region
  $region14: #{qnetwork_forward.1} parent=0 // pred_check
    _
  $region15: #{qnetwork_forward.1} parent=0 // pred_check_branch
    %17 = sbr.rel (0) target = $region17
  $region16: #{qnetwork_forward.1} parent=0 // pred_region
    _
  $region17: #{qnetwork_forward.1} parent=0 // pred_fallthru
    _
  // Predicated region
  $region18: #{qnetwork_forward.1} parent=0 // pred_check
    _
  $region19: #{qnetwork_forward.1} parent=0 // pred_check_branch
    %19 = sbr.rel (0) target = $region21
  $region20: #{qnetwork_forward.1} parent=0 // pred_region
    _
  $region21: #{qnetwork_forward.1} parent=0 // pred_fallthru
    _
  %v21 = vld [vmem:[%s0] sm:$0xff]
  %v22 = vpack.c.bf16 %v21, %v21
  %v23 = vld [vmem:[%s1] sm:$0xff]
  %v24 = vld [vmem:[%s1 + $0x8] sm:$0xff]
  %v25 = vld [vmem:[%s1 + $0x10] sm:$0xff]
  %v26 = vld [vmem:[%s1 + $0x18] sm:$0xff]
  %v27 = vld [vmem:[%s1 + $0x20] sm:$0xff]
  %v28 = vld [vmem:[%s1 + $0x28] sm:$0xff]
  %v29 = vld [vmem:[%s1 + $0x30] sm:$0x33]
  %v30 = vld [vmem:[%s2] sm:$0x3]
  %v32 = vlaneseq
  %v33 = vshrl.u32 %v32, 7
  %v34 = vsub.s32 0, %v33
  %v35 = vrot.slane %v30, %v34
  %v36 = vlaneseq
  %v37 = vshrl.u32 %v36, 7
  %v38 = vsub.s32 1, %v37
  %v39 = vrot.slane %v30, %v38
  %v49 = vunpack.c.l.b16 %v23
  %v50 = vunpack.c.h.b16 %v23
  %v51 = vunpack.c.l.b16 %v24
  %v52 = vunpack.c.h.b16 %v24
  %v53 = vunpack.c.l.b16 %v25
  %v54 = vunpack.c.h.b16 %v25
  %v55 = vunpack.c.l.b16 %v26
  %v56 = vunpack.c.h.b16 %v26
  %v57 = vunpack.c.l.b16 %v27
  %v58 = vunpack.c.h.b16 %v27
  %v59 = vunpack.c.l.b16 %v28
  %v60 = vunpack.c.h.b16 %v28
  %v61 = vunpack.c.l.b16 %v29
  %v62 = vunpack.c.h.b16 %v29
  %v63 = vpack.c.b16 %v51, %v49
  %v64 = vpack.c.b16 %v52, %v50
  %v65 = vpack.c.b16 %v55, %v53
  %v66 = vpack.c.b16 %v56, %v54
  %v67 = vpack.c.b16 %v59, %v57
  %v68 = vpack.c.b16 %v60, %v58
  %v69 = vpack.c.b16 %v61, %v61
  %v70 = vpack.c.b16 %v62, %v62
  %vm77 = vcmask 424960
  %v79 = vsel %vm77, %v22, 0
  %vm81 = vcmask 1041408
  %v83 = vsel %vm81, %v69, 0
  %v86 = vsel %vm81, %v70, 0
  %88 = vmatprep.subr.bf16.mxu0 %v64
  %89 = vmatpush1.bf16.msra.mxu0 %v63
  %90 = vmatprep.subr.bf16.mxu0 %v66
  %91 = vmatpush1.bf16.msra.mxu0 %v65
  %92 = vmatprep.subr.bf16.mxu0 %v68
  %93 = vmatpush1.bf16.msra.mxu0 %v67
  %94 = vmatprep.subr.bf16.mxu0 %v86
  %95 = vmatpush1.bf16.msra.mxu0 %v83
  %96 = vmatprep.subr.bf16.mxu0 0
  %97 = vmatpush1.bf16.msra.mxu0 0
  %98 = vmatprep.subr.bf16.mxu0 0
  %99 = vmatpush1.bf16.msra.mxu0 0
  %100 = vmatprep.subr.bf16.mxu0 0
  %101 = vmatpush1.bf16.msra.mxu0 0
  %102 = vmatprep.subr.bf16.mxu0 0
  %103 = vmatpush1.bf16.msra.mxu0 0
  %104 = vmatprep.subr.bf16.mxu0 0
  %105 = vmatpush1.bf16.msra.mxu0 0
  %106 = vmatprep.subr.bf16.mxu0 0
  %107 = vmatpush1.bf16.msra.mxu0 0
  %108 = vmatprep.subr.bf16.mxu0 0
  %109 = vmatpush1.bf16.msra.mxu0 0
  %110 = vmatprep.subr.bf16.mxu0 0
  %111 = vmatpush1.bf16.msra.mxu0 0
  %112 = vmatprep.subr.bf16.mxu0 0
  %113 = vmatpush1.bf16.msra.mxu0 0
  %114 = vmatprep.subr.bf16.mxu0 0
  %115 = vmatpush1.bf16.msra.mxu0 0
  %116 = vmatprep.subr.bf16.mxu0 0
  %117 = vmatpush1.bf16.msra.mxu0 0
  %118 = vmatprep.subr.bf16.mxu0 0
  %119 = vmatpush1.bf16.msra.mxu0 0
  %120 = vmatprep.mubr.bf16.mxu0 0
  %121 = vmatmul.mubr.bf16.gmra.mrb[0].mxu0 %v79
  %v122 = vpop.f32.mrb[0].mxu0
  %v123 = vadd.f32 %v35, %v122
  %v124 = vpop.f32.mrb[0].mxu0
  %v125 = vadd.f32 %v39, %v124
  %v126 = vpop.f32.mrb[0].mxu0
  %v127 = vpop.f32.mrb[0].mxu0
  %128 = vdwg.mxu0
  %v129 = vmax.f32 %v123, 0.0
  %v130 = vmax.f32 %v125, 0.0
  %v131 = vpack.c.bf16 %v129, %v129
  %v132 = vpack.c.bf16 %v130, %v130
  %v133 = vld [vmem:[%s3] sm:$0xf]
  %v134 = vld [vmem:[%s3 + $0x4] sm:$0xf]
  %v135 = vld [vmem:[%s3 + $0x8] sm:$0xf]
  %v136 = vld [vmem:[%s3 + $0xc] sm:$0xf]
  %v137 = vld [vmem:[%s3 + $0x10] sm:$0xf]
  %v138 = vld [vmem:[%s3 + $0x14] sm:$0xf]
  %v139 = vld [vmem:[%s3 + $0x18] sm:$0xf]
  %v140 = vld [vmem:[%s3 + $0x1c] sm:$0xf]
  %v141 = vld [vmem:[%s3 + $0x20] sm:$0xf]
  %v142 = vld [vmem:[%s3 + $0x24] sm:$0xf]
  %v143 = vld [vmem:[%s3 + $0x28] sm:$0xf]
  %v144 = vld [vmem:[%s3 + $0x2c] sm:$0xf]
  %v145 = vld [vmem:[%s3 + $0x30] sm:$0xf]
  %v146 = vld [vmem:[%s3 + $0x34] sm:$0xf]
  %v147 = vld [vmem:[%s3 + $0x38] sm:$0xf]
  %v148 = vld [vmem:[%s3 + $0x3c] sm:$0xf]
  %v149 = vld [vmem:[%s3 + $0x40] sm:$0xf]
  %v150 = vld [vmem:[%s3 + $0x44] sm:$0xf]
  %v151 = vld [vmem:[%s3 + $0x48] sm:$0xf]
  %v152 = vld [vmem:[%s3 + $0x4c] sm:$0xf]
  %v153 = vld [vmem:[%s3 + $0x50] sm:$0xf]
  %v154 = vld [vmem:[%s3 + $0x54] sm:$0xf]
  %v155 = vld [vmem:[%s3 + $0x58] sm:$0xf]
  %v156 = vld [vmem:[%s3 + $0x5c] sm:$0xf]
  %v157 = vld [vmem:[%s3 + $0x60] sm:$0xf]
  %v158 = vld [vmem:[%s3 + $0x64] sm:$0xf]
  %v159 = vld [vmem:[%s3 + $0x68] sm:$0xf]
  %v160 = vld [vmem:[%s3 + $0x6c] sm:$0xf]
  %v161 = vld [vmem:[%s3 + $0x70] sm:$0xf]
  %v162 = vld [vmem:[%s3 + $0x74] sm:$0xf]
  %v163 = vld [vmem:[%s3 + $0x78] sm:$0xf]
  %v164 = vld [vmem:[%s3 + $0x7c] sm:$0xf]
  %v165 = vld [vmem:[%s4] sm:$0x1]
  %v167 = vlaneseq
  %v168 = vshrl.u32 %v167, 7
  %v169 = vsub.s32 0, %v168
  %v170 = vrot.slane %v165, %v169
  %v204 = vunpack.c.l.b16 %v133
  %v205 = vunpack.c.l.b16 %v134
  %v206 = vunpack.c.l.b16 %v135
  %v207 = vunpack.c.l.b16 %v136
  %v208 = vunpack.c.l.b16 %v137
  %v209 = vunpack.c.l.b16 %v138
  %v210 = vunpack.c.l.b16 %v139
  %v211 = vunpack.c.l.b16 %v140
  %v212 = vunpack.c.l.b16 %v141
  %v213 = vunpack.c.l.b16 %v142
  %v214 = vunpack.c.l.b16 %v143
  %v215 = vunpack.c.l.b16 %v144
  %v216 = vunpack.c.l.b16 %v145
  %v217 = vunpack.c.l.b16 %v146
  %v218 = vunpack.c.l.b16 %v147
  %v219 = vunpack.c.l.b16 %v148
  %v220 = vunpack.c.l.b16 %v149
  %v221 = vunpack.c.l.b16 %v150
  %v222 = vunpack.c.l.b16 %v151
  %v223 = vunpack.c.l.b16 %v152
  %v224 = vunpack.c.l.b16 %v153
  %v225 = vunpack.c.l.b16 %v154
  %v226 = vunpack.c.l.b16 %v155
  %v227 = vunpack.c.l.b16 %v156
  %v228 = vunpack.c.l.b16 %v157
  %v229 = vunpack.c.l.b16 %v158
  %v230 = vunpack.c.l.b16 %v159
  %v231 = vunpack.c.l.b16 %v160
  %v232 = vunpack.c.l.b16 %v161
  %v233 = vunpack.c.l.b16 %v162
  %v234 = vunpack.c.l.b16 %v163
  %v235 = vunpack.c.l.b16 %v164
  %v236 = vpack.c.b16 %v205, %v204
  %v237 = vpack.c.b16 %v207, %v206
  %v238 = vpack.c.b16 %v209, %v208
  %v239 = vpack.c.b16 %v211, %v210
  %v240 = vpack.c.b16 %v213, %v212
  %v241 = vpack.c.b16 %v215, %v214
  %v242 = vpack.c.b16 %v217, %v216
  %v243 = vpack.c.b16 %v219, %v218
  %v244 = vpack.c.b16 %v221, %v220
  %v245 = vpack.c.b16 %v223, %v222
  %v246 = vpack.c.b16 %v225, %v224
  %v247 = vpack.c.b16 %v227, %v226
  %v248 = vpack.c.b16 %v229, %v228
  %v249 = vpack.c.b16 %v231, %v230
  %v250 = vpack.c.b16 %v233, %v232
  %v251 = vpack.c.b16 %v235, %v234
  %268 = vmatprep.subr.bf16.mxu0 0
  %269 = vmatpush1.bf16.msra.mxu0 %v236
  %270 = vmatprep.subr.bf16.mxu0 0
  %271 = vmatpush1.bf16.msra.mxu0 %v237
  %272 = vmatprep.subr.bf16.mxu0 0
  %273 = vmatpush1.bf16.msra.mxu0 %v238
  %274 = vmatprep.subr.bf16.mxu0 0
  %275 = vmatpush1.bf16.msra.mxu0 %v239
  %276 = vmatprep.subr.bf16.mxu0 0
  %277 = vmatpush1.bf16.msra.mxu0 %v240
  %278 = vmatprep.subr.bf16.mxu0 0
  %279 = vmatpush1.bf16.msra.mxu0 %v241
  %280 = vmatprep.subr.bf16.mxu0 0
  %281 = vmatpush1.bf16.msra.mxu0 %v242
  %282 = vmatprep.subr.bf16.mxu0 0
  %283 = vmatpush1.bf16.msra.mxu0 %v243
  %284 = vmatprep.subr.bf16.mxu0 0
  %285 = vmatpush1.bf16.msra.mxu0 %v244
  %286 = vmatprep.subr.bf16.mxu0 0
  %287 = vmatpush1.bf16.msra.mxu0 %v245
  %288 = vmatprep.subr.bf16.mxu0 0
  %289 = vmatpush1.bf16.msra.mxu0 %v246
  %290 = vmatprep.subr.bf16.mxu0 0
  %291 = vmatpush1.bf16.msra.mxu0 %v247
  %292 = vmatprep.subr.bf16.mxu0 0
  %293 = vmatpush1.bf16.msra.mxu0 %v248
  %294 = vmatprep.subr.bf16.mxu0 0
  %295 = vmatpush1.bf16.msra.mxu0 %v249
  %296 = vmatprep.subr.bf16.mxu0 0
  %297 = vmatpush1.bf16.msra.mxu0 %v250
  %298 = vmatprep.subr.bf16.mxu0 0
  %299 = vmatpush1.bf16.msra.mxu0 %v251
  %300 = vmatprep.mubr.bf16.mxu0 %v132
  %301 = vmatmul.mubr.bf16.gmra.mrb[0].mxu0 %v131
  %v302 = vpop.f32.mrb[0].mxu0
  %v303 = vadd.f32 %v170, %v302
  %v304 = vpop.f32.mrb[0].mxu0
  %v305 = vpop.f32.mrb[0].mxu0
  %v306 = vpop.f32.mrb[0].mxu0
  %307 = vdwg.mxu0
  %vm308 = vcmask 64512
  %309 = vst.msk [vmem:[%s5] sm:$0xff] %vm308, %v303
  // Predicated region
  $region22: #{qnetwork_forward.1} parent=0 // pred_check
    _
  $region23: #{qnetwork_forward.1} parent=0 // pred_check_branch
    %311 = sbr.rel (0) target = $region25
  $region24: #{qnetwork_forward.1} parent=0 // pred_region
    _
  $region25: #{qnetwork_forward.1} parent=0 // pred_fallthru
    _
  // Predicated region
  $region26: #{qnetwork_forward.1} parent=0 // pred_check
    _
  $region27: #{qnetwork_forward.1} parent=0 // pred_check_branch
    %313 = sbr.rel (0) target = $region29
  $region28: #{qnetwork_forward.1} parent=0 // pred_region
    _
  $region29: #{qnetwork_forward.1} parent=0 // pred_fallthru
    _

</llo_original>
